<compile_context>
chip_gen: v6e
topology: v6e:2x2x1
jax: 0.10.0
libtpu: 0.0.40
codegen_flags: <defaults>
</compile_context>

<pallas_src>
import functools

import jax
import jax.numpy as jnp
from jax import lax
from jax.experimental import pallas as pl
from jax.experimental.pallas import tpu as pltpu

_SCALE = 30000000.0
_DN = (((1,), (1,)), ((), ()))           # contract the lane (K) dim of both operands
_VMEM_BUDGET = 40 * 1024 * 1024          # conservative; v7x has 64 MiB / TensorCore


def _round_up(x, m):
    return ((x + m - 1) // m) * m


def _sublane_pack(dtype):
    # 8 rows/sublane-group for 4-byte, 16 for 2-byte, 32 for 1-byte dtypes.
    return max(8, 32 // jnp.dtype(dtype).itemsize)


def _pick_tk(k_pad, tk_max):
    """Largest multiple of 128 that divides k_pad and is <= max(tk_max, 128)."""
    q = k_pad // 128
    best, d = 1, 1
    limit = max(tk_max, 128)
    while d * d <= q:
        if q % d == 0:
            for c in (d, q // d):
                if c * 128 <= limit and c > best:
                    best = c
        d += 1
    return best * 128


def _vmem_limit(need_bytes):
    return int(min(64 * 1024 * 1024, 2 * need_bytes + 2 * 1024 * 1024))


def _gram_diff(left_x, left_y, right_x, right_y, precision):
    """One K-tile's contribution to (Gx_raw - Gy_raw) via a single fused matmul."""
    u = jnp.concatenate([left_x, left_y], axis=1)
    v = jnp.concatenate([right_x, -right_y], axis=1)
    return lax.dot_general(u, v, _DN, preferred_element_type=jnp.float32,
                           precision=precision)


# ----------------------------- kernels --------------------------------------


def _single_kernel(fx_ref, fy_ref, o_ref, *, inv_gram, mse_scale, precision):
    fx = fx_ref[...]
    fy = fy_ref[...]
    d = _gram_diff(fx, fy, fx, fy, precision) * inv_gram
    o_ref[0, 0] = jnp.sum(d * d) * mse_scale


def _tiled_kernel(fx_ref, fy_ref, o_ref, acc_ref, *, inv_gram, mse_scale,
                  precision):
    k = pl.program_id(0)

    @pl.when(k == 0)
    def _init():
        acc_ref[...] = jnp.zeros_like(acc_ref)

    fx = fx_ref[...]
    fy = fy_ref[...]
    acc_ref[...] += _gram_diff(fx, fy, fx, fy, precision)

    @pl.when(k == pl.num_programs(0) - 1)
    def _finalize():
        d = acc_ref[...] * inv_gram
        o_ref[0, 0] = jnp.sum(d * d) * mse_scale


def _strip_kernel(fxs_ref, fys_ref, fxf_ref, fyf_ref, o_ref, acc_ref, *,
                  inv_gram, mse_scale, precision):
    k = pl.program_id(1)

    @pl.when(k == 0)
    def _init():
        acc_ref[...] = jnp.zeros_like(acc_ref)

    acc_ref[...] += _gram_diff(fxs_ref[...], fys_ref[...],
                               fxf_ref[...], fyf_ref[...], precision)

    @pl.when(k == pl.num_programs(1) - 1)
    def _finalize():
        d = acc_ref[...] * inv_gram
        o_ref[0, 0] = jnp.sum(d * d) * mse_scale


# ----------------------------- wrapper ---------------------------------------


def style_loss(x, y, *, tk_max=2048, compute_dtype=None, precision=None,
               force_tiled=False, m_strips=None):
    """x, y: NCHW arrays of identical shape. Returns scalar f32 loss."""
    assert x.shape == y.shape, "StyleLoss expects matching shapes"
    N, C, H, W = x.shape
    M, K = N * C, H * W

    cdt = jnp.dtype(compute_dtype) if compute_dtype is not None else jnp.dtype(x.dtype)
    isz = cdt.itemsize
    pack = _sublane_pack(cdt)

    fx = x.reshape(M, K)
    fy = y.reshape(M, K)
    if fx.dtype != cdt:
        fx = fx.astype(cdt)
        fy = fy.astype(cdt)

    # Minimal alignment only (no K-to-tk over-padding). Zero rows/cols change
    # neither the raw Gram sums nor the squared-difference sum; normalization
    # constants below use the ORIGINAL M, K.
    m_pad0 = _round_up(M, pack)
    k_pad = _round_up(K, 128)
    tk = _pick_tk(k_pad, tk_max)

    inv_gram = 1.0 / float(M * K)
    mse_scale = _SCALE / float(M * M)

    # ---- VMEM footprint estimates (bytes) -----------------------------------
    def vmem_single(m_p):
        return (2 * 2 * m_p * k_pad * isz        # fx, fy buffers
                + 2 * m_p * 2 * k_pad * isz      # u, v concat temps
                + m_p * m_p * 4)                 # dot result

    def vmem_tiled(m_p, tk_):
        return (2 * m_p * m_p * 4                # accumulator + dot result
                + 2 * 2 * m_p * tk_ * isz        # 2 inputs x 2 pipeline buffers
                + 2 * m_p * 2 * tk_ * isz)       # u, v concat temps

    def vmem_strip(tm_, m_p, tk_):
        return (2 * tm_ * m_p * 4
                + 2 * 2 * (tm_ + m_p) * tk_ * isz
                + (tm_ + m_p) * 2 * tk_ * isz)

    # ---- pick execution path -------------------------------------------------
    use_strips = (m_strips is not None and m_strips > 1)
    if m_strips is None:
        m_strips = 1
        # Shrink tk first, then strip the Gram rows if the accumulator itself
        # busts the budget (large M — also enables 2-TC parallelism on v7x).
        while tk > 256 and vmem_tiled(m_pad0, tk) > _VMEM_BUDGET:
            tk = _pick_tk(k_pad, tk - 128)
        if vmem_tiled(m_pad0, tk) > _VMEM_BUDGET:
            use_strips = True
            m_strips = 2
            while True:
                tm = _round_up((m_pad0 + m_strips - 1) // m_strips, pack)
                if vmem_strip(tm, tm * m_strips, tk) <= _VMEM_BUDGET or tm <= pack:
                    break
                m_strips *= 2
    nk = k_pad // tk

    if use_strips:
        tm = _round_up((m_pad0 + m_strips - 1) // m_strips, pack)
        m_pad = tm * m_strips
    else:
        m_pad = m_pad0

    if (m_pad, k_pad) != (M, K):
        fx = jnp.pad(fx, ((0, m_pad - M), (0, k_pad - K)))
        fy = jnp.pad(fy, ((0, m_pad - M), (0, k_pad - K)))

    kwargs = dict(inv_gram=inv_gram, mse_scale=mse_scale, precision=precision)

    # ---- path 1: single shot (small problems) --------------------------------
    single_shot = (not force_tiled and not use_strips and nk == 1
                   and vmem_single(m_pad) <= 24 * 1024 * 1024)
    if single_shot:
        out = pl.pallas_call(
            functools.partial(_single_kernel, **kwargs),
            out_shape=jax.ShapeDtypeStruct((1, 1), jnp.float32),
            grid_spec=pltpu.PrefetchScalarGridSpec(
                num_scalar_prefetch=0,
                grid=(1,),
                in_specs=[
                    pl.BlockSpec((m_pad, k_pad), lambda i: (0, 0)),
                    pl.BlockSpec((m_pad, k_pad), lambda i: (0, 0)),
                ],
                out_specs=pl.BlockSpec((1, 1), lambda i: (0, 0),
                                       memory_space=pltpu.SMEM),
            ),
            compiler_params=pltpu.CompilerParams(
                dimension_semantics=("arbitrary",),
                vmem_limit_bytes=_vmem_limit(vmem_single(m_pad))),
        )(fx, fy)
        return out[0, 0]

    # ---- path 2: K-streamed, single (M, M) accumulator ------------------------
    if not use_strips:
        out = pl.pallas_call(
            functools.partial(_tiled_kernel, **kwargs),
            out_shape=jax.ShapeDtypeStruct((1, 1), jnp.float32),
            grid_spec=pltpu.PrefetchScalarGridSpec(
                num_scalar_prefetch=0,
                grid=(nk,),
                in_specs=[
                    pl.BlockSpec((m_pad, tk), lambda k: (0, k)),
                    pl.BlockSpec((m_pad, tk), lambda k: (0, k)),
                ],
                out_specs=pl.BlockSpec((1, 1), lambda k: (0, 0),
                                       memory_space=pltpu.SMEM),
                scratch_shapes=[pltpu.VMEM((m_pad, m_pad), jnp.float32)],
            ),
            compiler_params=pltpu.CompilerParams(
                dimension_semantics=("arbitrary",),
                vmem_limit_bytes=_vmem_limit(vmem_tiled(m_pad, tk))),
        )(fx, fy)
        return out[0, 0]

    # ---- path 3: M-strip x K grid (large M / v7x 2-TC) ------------------------
    out = pl.pallas_call(
        functools.partial(_strip_kernel, **kwargs),
        out_shape=jax.ShapeDtypeStruct((m_strips, 1), jnp.float32),
        grid_spec=pltpu.PrefetchScalarGridSpec(
            num_scalar_prefetch=0,
            grid=(m_strips, nk),
            in_specs=[
                pl.BlockSpec((tm, tk), lambda i, k: (i, k)),       # fx row strip
                pl.BlockSpec((tm, tk), lambda i, k: (i, k)),       # fy row strip
                pl.BlockSpec((m_pad, tk), lambda i, k: (0, k)),    # fx full rows
                pl.BlockSpec((m_pad, tk), lambda i, k: (0, k)),    # fy full rows
            ],
            out_specs=pl.BlockSpec((1, 1), lambda i, k: (i, 0),
                                   memory_space=pltpu.SMEM),
            scratch_shapes=[pltpu.VMEM((tm, m_pad), jnp.float32)],
        ),
        compiler_params=pltpu.CompilerParams(
            dimension_semantics=("parallel", "arbitrary"),
            vmem_limit_bytes=_vmem_limit(vmem_strip(tm, m_pad, tk))),
    )(fx, fy, fx, fy)
    return jnp.sum(out)


# ----------------------------- reference & test ------------------------------


def _reference_style_loss(x, y):
    """Pure-JAX reference matching the PyTorch forward exactly."""
    N, C, H, W = x.shape
    fx = x.reshape(N * C, H * W)
    fy = y.reshape(N * C, H * W)
    gx = (fx @ fx.T) / (N * C * H * W)
    gy = (fy @ fy.T) / (N * C * H * W)
    return jnp.mean((gx - gy) ** 2) * _SCALE


if __name__ == "__main__":
    key = jax.random.PRNGKey(0)
    kx, ky = jax.random.split(key)

    def rel_err(a, b):
        return abs(float(a) - float(b)) / max(abs(float(b)), 1e-6)

    # Small conv-feature-map shapes: (N, C, H, W)
    x = jax.random.normal(kx, (2, 4, 16, 16), dtype=jnp.float32)
    y = jax.random.normal(ky, (2, 4, 16, 16), dtype=jnp.float32)
    ref = jax.block_until_ready(_reference_style_loss(x, y))

    # 1) auto path (single-shot for this size)
    l1 = jax.block_until_ready(style_loss(x, y))
    assert jnp.isfinite(l1) and rel_err(l1, ref) < 1e-4, (float(l1), float(ref))

    # 2) forced K-streamed path (exercises the pipelined accumulator kernel)
    l2 = jax.block_until_ready(style_loss(x, y, tk_max=128, force_tiled=True))
    assert jnp.isfinite(l2) and rel_err(l2, ref) < 1e-4, (float(l2), float(ref))

    # 3) forced M-strip x K path (exercises the parallel strip kernel)
    x2 = jax.random.normal(kx, (2, 8, 16, 16), dtype=jnp.float32)
    y2 = jax.random.normal(ky, (2, 8, 16, 16), dtype=jnp.float32)
    ref2 = jax.block_until_ready(_reference_style_loss(x2, y2))
    l3 = jax.block_until_ready(style_loss(x2, y2, tk_max=128, m_strips=2))
    assert jnp.isfinite(l3) and rel_err(l3, ref2) < 1e-4, (float(l3), float(ref2))

    # 4) bf16 compute path (halves HBM/VMEM traffic; looser tolerance since the
    #    3e7 scale amplifies bf16 input rounding)
    l4 = jax.block_until_ready(style_loss(x, y, compute_dtype=jnp.bfloat16))
    assert jnp.isfinite(l4) and rel_err(l4, ref) < 0.1, (float(l4), float(ref))

    print("KERNEL_OK")
</pallas_src>

<mosaic_0001>
module attributes {stable_mosaic.version = 11 : i64} {
  func.func @_single_kernel(%arg0: i32, %arg1: memref<8x256xf32, #tpu.memory_space<vmem>>, %arg2: memref<8x256xf32, #tpu.memory_space<vmem>>, %arg3: memref<1x1xf32, #tpu.memory_space<smem>>) attributes {dimension_semantics = [#tpu.dimension_semantics<arbitrary>], iteration_bounds = array<i64: 1>, scalar_prefetch = 0 : i64, scratch_operands = 0 : i64, tpu.core_type = #tpu.core_type<tc>, window_params = [{pipeline_mode = #tpu.pipeline_mode<synchronous>, transform_indices = @transform_0, window_bounds = array<i64: 8, 256>}, {pipeline_mode = #tpu.pipeline_mode<synchronous>, transform_indices = @transform_1, window_bounds = array<i64: 8, 256>}, {transform_indices = @transform_2, window_bounds = array<i64: 1, 1>}]} {
    %c0 = arith.constant 0 : index
    %c0_0 = arith.constant 0 : index
    %0 = vector.load %arg1[%c0, %c0_0] : memref<8x256xf32, #tpu.memory_space<vmem>>, vector<8x256xf32>
    %c0_1 = arith.constant 0 : index
    %c0_2 = arith.constant 0 : index
    %1 = vector.load %arg2[%c0_1, %c0_2] : memref<8x256xf32, #tpu.memory_space<vmem>>, vector<8x256xf32>
    %2 = tpu.concatenate %0, %1 in 1 : vector<8x256xf32>, vector<8x256xf32> -> vector<8x512xf32>
    %cst = arith.constant 0.000000e+00 : f32
    %3 = vector.broadcast %cst : f32 to vector<8x256xf32>
    %4 = arith.subf %3, %1 : vector<8x256xf32>
    %5 = tpu.concatenate %0, %4 in 1 : vector<8x256xf32>, vector<8x256xf32> -> vector<8x512xf32>
    %cst_3 = arith.constant dense<0.000000e+00> : vector<8x8xf32>
    %6 = tpu.matmul %2, %5, %cst_3 {dimension_numbers = #tpu.dot_dimension_numbers<[1], [1], [0], [0], [0, 0, 1, 0], [], []>} : vector<8x512xf32>, vector<8x512xf32>, vector<8x8xf32> -> vector<8x8xf32>
    %cst_4 = arith.constant 4.8828125E-4 : f32
    %7 = vector.broadcast %cst_4 : f32 to vector<8x8xf32>
    %8 = arith.mulf %6, %7 : vector<8x8xf32>
    %9 = arith.mulf %8, %8 : vector<8x8xf32>
    %10 = vector.shape_cast %9 : vector<8x8xf32> to vector<1x8x8xf32>
    %cst_5 = arith.constant dense<0.000000e+00> : vector<1xf32>
    %11 = vector.multi_reduction <add>, %10, %cst_5 [1, 2] : vector<1x8x8xf32> to vector<1xf32>
    %12 = vector.shape_cast %11 : vector<1xf32> to vector<1x1x1xf32>
    %13 = vector.extract %12[0, 0, 0] : f32 from vector<1x1x1xf32>
    %cst_6 = arith.constant 4.687500e+05 : f32
    %14 = arith.mulf %13, %cst_6 : f32
    %c0_7 = arith.constant 0 : index
    %c0_8 = arith.constant 0 : index
    %15 = memref.load %arg3[%c0_7, %c0_8] : memref<1x1xf32, #tpu.memory_space<smem>>
    memref.store %14, %arg3[%c0_7, %c0_8] : memref<1x1xf32, #tpu.memory_space<smem>>
    return
  }
  func.func @transform_0(%arg0: i32) -> (i32, i32) {
    %c0_i32 = arith.constant 0 : i32
    %c0_i32_0 = arith.constant 0 : i32
    %c0_i32_1 = arith.constant 0 : i32
    return %c0_i32, %c0_i32_0 : i32, i32
  }
  func.func @transform_1(%arg0: i32) -> (i32, i32) {
    %c0_i32 = arith.constant 0 : i32
    %c0_i32_0 = arith.constant 0 : i32
    %c0_i32_1 = arith.constant 0 : i32
    return %c0_i32, %c0_i32_0 : i32, i32
  }
  func.func @transform_2(%arg0: i32) -> (i32, i32) {
    %c0_i32 = arith.constant 0 : i32
    %c0_i32_0 = arith.constant 0 : i32
    %c0_i32_1 = arith.constant 0 : i32
    return %c0_i32, %c0_i32_0 : i32, i32
  }
}

</mosaic_0001>

<llo_original>
// kernel: tpu_custom_call.1
$region0: #{tpu_custom_call.1}
  #allocation0 [shape = 'u32[]', space=smem, size = 0x4, offset = 0x4, fixed_abs, tag = 'smem constant byte address 0x4 - core index']
  #allocation1 [shape = 'u32[144,128]{1,0:T(1,128)}', space=vmem, size = 0x12000, scoped, tag = 'internal scratch']
  %s0 = inlined_call_operand.hbm [shape: f32[8,256], index: 0, kind: input, shape index: {}]
  %s1 = inlined_call_operand.hbm [shape: f32[8,256], index: 1, kind: input, shape index: {}]
  %s2 = inlined_call_operand.hbm [shape: f32[1,1], index: 2, kind: output, shape index: {}]
  %s3 = sld [smem:[#allocation0]]
  $region26: #{tpu_custom_call.1} parent=0
    _
  %s5 = ssub.s32 1, %s3
  %s6 = scalar_select 0, %s5, %s3
  $region1: #{tpu_custom_call.1} parent=0
    #allocation2 [shape = 'u8[8192]{0}', space=vmem, size = 0x2000, scoped, tag = 'input window, operand 0, single buffered']
    #allocation3 [shape = 's32[1]{0}', space=sflag, size = 0x4, scoped, tag = 'scoped memory for tpu_custom_call.1']
    #allocation4 [shape = 's32[1]{0}', space=sflag, size = 0x4, scoped, tag = 'scoped memory for tpu_custom_call.1']
    #allocation5 [shape = 'u8[8192]{0}', space=vmem, size = 0x2000, scoped, tag = 'input window, operand 1, single buffered']
    #allocation6 [shape = 's32[1]{0}', space=sflag, size = 0x4, scoped, tag = 'scoped memory for tpu_custom_call.1']
    #allocation7 [shape = 'u8[512]{0}', space=smem, size = 0x200, scoped, tag = 'output window, operand 0, single buffered']
    %7 = vsyncpa [#allocation3], 0
    %8 = vsyncpa [#allocation6], 0
    %9 = vsyncpa [#allocation4], 0
    // Predicated region
    $region2: #{tpu_custom_call.1} parent=1 // pred_check
      _
    $region3: #{tpu_custom_call.1} parent=1 // pred_check_branch
      %11 = sbr.rel (0) target = $region5
    $region4: #{tpu_custom_call.1} parent=1 // pred_region
      %s13 = ssub.s32 256, 256
      %14 = vsyncadd [#allocation3], %s13
      %s16 = sshll.u32 [#allocation2], 4
      %s17 = int_to_ptr.vmem [resolvable:$true] %s16
      %19 = dma.hbm_to_vmem [thread:$0]  %s0, 256, %s17, [#allocation3]
    $region5: #{tpu_custom_call.1} parent=1 // pred_fallthru
      _
    // Predicated region
    $region6: #{tpu_custom_call.1} parent=1 // pred_check
      _
    $region7: #{tpu_custom_call.1} parent=1 // pred_check_branch
      %21 = sbr.rel (0) target = $region9
    $region8: #{tpu_custom_call.1} parent=1 // pred_region
      %s23 = ssub.s32 256, 256
      %24 = vsyncadd [#allocation6], %s23
      %s26 = sshll.u32 [#allocation5], 4
      %s27 = int_to_ptr.vmem [resolvable:$true] %s26
      %29 = dma.hbm_to_vmem [thread:$0]  %s1, 256, %s27, [#allocation6]
    $region9: #{tpu_custom_call.1} parent=1 // pred_fallthru
      _
    // Predicated region
    $region10: #{tpu_custom_call.1} parent=1 // pred_check
      _
    $region11: #{tpu_custom_call.1} parent=1 // pred_check_branch
      %31 = sbr.rel (0) target = $region13
    $region12: #{tpu_custom_call.1} parent=1 // pred_region
      %32 = dma.done [#allocation3], 256
    $region13: #{tpu_custom_call.1} parent=1 // pred_fallthru
      _
    // Predicated region
    $region14: #{tpu_custom_call.1} parent=1 // pred_check
      _
    $region15: #{tpu_custom_call.1} parent=1 // pred_check_branch
      %34 = sbr.rel (0) target = $region17
    $region16: #{tpu_custom_call.1} parent=1 // pred_region
      %35 = dma.done [#allocation6], 256
    $region17: #{tpu_custom_call.1} parent=1 // pred_fallthru
      _
    %v36 = vld [vmem:[#allocation2] sm:$0xff]
    %v37 = vld [vmem:[#allocation2 + $0x8] sm:$0xff]
    %v38 = vld [vmem:[#allocation5] sm:$0xff]
    %v39 = vld [vmem:[#allocation5 + $0x8] sm:$0xff]
    %v40 = vsub.f32 0.0, %v38
    %v41 = vsub.f32 0.0, %v39
    %42 = vmatprep.subr.mxu0 0.0
    %43 = vmatpush1.xpose.msra.mxu0 0.0
    %44 = vmatprep.subr.mxu0 0.0
    %45 = vmatpush1.xpose.msra.mxu0 0.0
    %46 = vmatprep.subr.mxu0 0.0
    %47 = vmatpush1.xpose.msra.mxu0 0.0
    %48 = vmatprep.subr.mxu0 0.0
    %49 = vmatpush1.xpose.msra.mxu0 0.0
    %50 = vmatprep.subr.mxu0 0.0
    %51 = vmatpush1.xpose.msra.mxu0 0.0
    %52 = vmatprep.subr.mxu0 0.0
    %53 = vmatpush1.xpose.msra.mxu0 0.0
    %54 = vmatprep.subr.mxu0 0.0
    %55 = vmatpush1.xpose.msra.mxu0 0.0
    %56 = vmatprep.subr.mxu0 0.0
    %57 = vmatpush1.xpose.msra.mxu0 0.0
    %58 = vmatprep.subr.mxu0 0.0
    %59 = vmatpush1.xpose.msra.mxu0 0.0
    %60 = vmatprep.subr.mxu0 0.0
    %61 = vmatpush1.xpose.msra.mxu0 0.0
    %62 = vmatprep.subr.mxu0 0.0
    %63 = vmatpush1.xpose.msra.mxu0 0.0
    %64 = vmatprep.subr.mxu0 0.0
    %65 = vmatpush1.xpose.msra.mxu0 0.0
    %66 = vmatprep.subr.mxu0 0.0
    %67 = vmatpush1.xpose.msra.mxu0 0.0
    %68 = vmatprep.subr.mxu0 0.0
    %69 = vmatpush1.xpose.msra.mxu0 0.0
    %70 = vmatprep.subr.mxu0 0.0
    %71 = vmatpush1.xpose.msra.mxu0 0.0
    %72 = vmatprep.subr.mxu0 %v37
    %73 = vmatpush1.xpose.msra.mxu0 %v36
    %74 = vmatprep.subr.mxu0 0.0
    %75 = vmatpush2.xpose.msra.mxu0 0.0
    %76 = vmatprep.subr.mxu0 0.0
    %77 = vmatpush2.xpose.msra.mxu0 0.0
    %78 = vmatprep.subr.mxu0 0.0
    %79 = vmatpush2.xpose.msra.mxu0 0.0
    %80 = vmatprep.subr.mxu0 0.0
    %81 = vmatpush2.xpose.msra.mxu0 0.0
    %82 = vmatprep.subr.mxu0 0.0
    %83 = vmatpush2.xpose.msra.mxu0 0.0
    %84 = vmatprep.subr.mxu0 0.0
    %85 = vmatpush2.xpose.msra.mxu0 0.0
    %86 = vmatprep.subr.mxu0 0.0
    %87 = vmatpush2.xpose.msra.mxu0 0.0
    %88 = vmatprep.subr.mxu0 0.0
    %89 = vmatpush2.xpose.msra.mxu0 0.0
    %90 = vmatprep.subr.mxu0 0.0
    %91 = vmatpush2.xpose.msra.mxu0 0.0
    %92 = vmatprep.subr.mxu0 0.0
    %93 = vmatpush2.xpose.msra.mxu0 0.0
    %94 = vmatprep.subr.mxu0 0.0
    %95 = vmatpush2.xpose.msra.mxu0 0.0
    %96 = vmatprep.subr.mxu0 0.0
    %97 = vmatpush2.xpose.msra.mxu0 0.0
    %98 = vmatprep.subr.mxu0 0.0
    %99 = vmatpush2.xpose.msra.mxu0 0.0
    %100 = vmatprep.subr.mxu0 0.0
    %101 = vmatpush2.xpose.msra.mxu0 0.0
    %102 = vmatprep.subr.mxu0 0.0
    %103 = vmatpush2.xpose.msra.mxu0 0.0
    %104 = vmatprep.subr.mxu0 0.0
    %105 = vmatpush2.xpose.msra.mxu0 0.0
    %106 = vmatprep.mubr.f32.mxu0 %v37
    %107 = vmatmul.mubr.f32.gmra.mxu0 %v36
    %v108 = vpop.f32.mrf.mxu0
    %v109 = vadd.f32 0.0, %v108
    %v110 = vpop.f32.mrf.mxu0
    %111 = vdwg.mxu0
    %112 = vmatprep.subr.mxu0 0.0
    %113 = vmatpush1.xpose.msra.mxu0 0.0
    %114 = vmatprep.subr.mxu0 0.0
    %115 = vmatpush1.xpose.msra.mxu0 0.0
    %116 = vmatprep.subr.mxu0 0.0
    %117 = vmatpush1.xpose.msra.mxu0 0.0
    %118 = vmatprep.subr.mxu0 0.0
    %119 = vmatpush1.xpose.msra.mxu0 0.0
    %120 = vmatprep.subr.mxu0 0.0
    %121 = vmatpush1.xpose.msra.mxu0 0.0
    %122 = vmatprep.subr.mxu0 0.0
    %123 = vmatpush1.xpose.msra.mxu0 0.0
    %124 = vmatprep.subr.mxu0 0.0
    %125 = vmatpush1.xpose.msra.mxu0 0.0
    %126 = vmatprep.subr.mxu0 0.0
    %127 = vmatpush1.xpose.msra.mxu0 0.0
    %128 = vmatprep.subr.mxu0 0.0
    %129 = vmatpush1.xpose.msra.mxu0 0.0
    %130 = vmatprep.subr.mxu0 0.0
    %131 = vmatpush1.xpose.msra.mxu0 0.0
    %132 = vmatprep.subr.mxu0 0.0
    %133 = vmatpush1.xpose.msra.mxu0 0.0
    %134 = vmatprep.subr.mxu0 0.0
    %135 = vmatpush1.xpose.msra.mxu0 0.0
    %136 = vmatprep.subr.mxu0 0.0
    %137 = vmatpush1.xpose.msra.mxu0 0.0
    %138 = vmatprep.subr.mxu0 0.0
    %139 = vmatpush1.xpose.msra.mxu0 0.0
    %140 = vmatprep.subr.mxu0 0.0
    %141 = vmatpush1.xpose.msra.mxu0 0.0
    %142 = vmatprep.subr.mxu0 %v41
    %143 = vmatpush1.xpose.msra.mxu0 %v40
    %144 = vmatprep.subr.mxu0 0.0
    %145 = vmatpush2.xpose.msra.mxu0 0.0
    %146 = vmatprep.subr.mxu0 0.0
    %147 = vmatpush2.xpose.msra.mxu0 0.0
    %148 = vmatprep.subr.mxu0 0.0
    %149 = vmatpush2.xpose.msra.mxu0 0.0
    %150 = vmatprep.subr.mxu0 0.0
    %151 = vmatpush2.xpose.msra.mxu0 0.0
    %152 = vmatprep.subr.mxu0 0.0
    %153 = vmatpush2.xpose.msra.mxu0 0.0
    %154 = vmatprep.subr.mxu0 0.0
    %155 = vmatpush2.xpose.msra.mxu0 0.0
    %156 = vmatprep.subr.mxu0 0.0
    %157 = vmatpush2.xpose.msra.mxu0 0.0
    %158 = vmatprep.subr.mxu0 0.0
    %159 = vmatpush2.xpose.msra.mxu0 0.0
    %160 = vmatprep.subr.mxu0 0.0
    %161 = vmatpush2.xpose.msra.mxu0 0.0
    %162 = vmatprep.subr.mxu0 0.0
    %163 = vmatpush2.xpose.msra.mxu0 0.0
    %164 = vmatprep.subr.mxu0 0.0
    %165 = vmatpush2.xpose.msra.mxu0 0.0
    %166 = vmatprep.subr.mxu0 0.0
    %167 = vmatpush2.xpose.msra.mxu0 0.0
    %168 = vmatprep.subr.mxu0 0.0
    %169 = vmatpush2.xpose.msra.mxu0 0.0
    %170 = vmatprep.subr.mxu0 0.0
    %171 = vmatpush2.xpose.msra.mxu0 0.0
    %172 = vmatprep.subr.mxu0 0.0
    %173 = vmatpush2.xpose.msra.mxu0 0.0
    %174 = vmatprep.subr.mxu0 0.0
    %175 = vmatpush2.xpose.msra.mxu0 0.0
    %176 = vmatprep.mubr.f32.mxu0 %v39
    %177 = vmatmul.mubr.f32.gmra.mxu0 %v38
    %v178 = vpop.f32.mrf.mxu0
    %v179 = vadd.f32 %v109, %v178
    %v180 = vpop.f32.mrf.mxu0
    %181 = vdwg.mxu0
    %v182 = vmul.f32 %v179, 0.00048828125
    %v183 = vmul.f32 %v182, %v182
    %vm184 = vcmask 64512
    %v185 = vsel %vm184, %v183, 0.0
    %186 = vadd.xlane.f32.xlu0 %v185
    %v187 = vpop.xlane.xlu0 %186
    %v188 = vrot.slane %v187, 4
    %v189 = vadd.f32 %v187, %v188
    %v190 = vrot.slane %v189, 2
    %v191 = vadd.f32 %v189, %v190
    %v192 = vrot.slane %v191, 1
    %v193 = vadd.f32 %v191, %v192
    %s194 = vtos %v193
    %s195 = smul.f32 %s194, 468750.0
    %s196 = scalar_lea.smem [#allocation7], 0
    %197 = sst [smem:[%s196]] %s195
    // Predicated region
    $region18: #{tpu_custom_call.1} parent=1 // pred_check
      _
    $region19: #{tpu_custom_call.1} parent=1 // pred_check_branch
      %199 = sbr.rel (0) target = $region21
    $region20: #{tpu_custom_call.1} parent=1 // pred_region
      %s201 = ssub.s32 16, 16
      %202 = vsyncadd [#allocation4], %s201
      %205 = dma.smem_to_hbm [#allocation7], 16, %s2, [#allocation4]
    $region21: #{tpu_custom_call.1} parent=1 // pred_fallthru
      _
    // Predicated region
    $region22: #{tpu_custom_call.1} parent=1 // pred_check
      _
    $region23: #{tpu_custom_call.1} parent=1 // pred_check_branch
      %207 = sbr.rel (0) target = $region25
    $region24: #{tpu_custom_call.1} parent=1 // pred_region
      %208 = dma.done [#allocation4], 16
    $region25: #{tpu_custom_call.1} parent=1 // pred_fallthru
      _
    %209 = sfence
    %210 = vsyncpa [#allocation3], 1
    %211 = vsyncpa [#allocation6], 1
    %212 = vsyncpa [#allocation4], 1

</llo_original>
